<compile_context>
chip_gen: v5e
topology: v5e:2x2
jax: 0.10.0
libtpu: 0.0.40
codegen_flags: <defaults>
</compile_context>

<pallas_src>
import math

import jax
import jax.numpy as jnp
from jax.experimental import pallas as pl
from jax.experimental.pallas import tpu as pltpu


def _round_up(x, m):
    return ((x + m - 1) // m) * m


# ---------------------------------------------------------------------------
# Kernel 1: support = x @ W   (one (TM, Fin) x (Fin, Fout_pad) tile per step)
# ---------------------------------------------------------------------------
def _support_kernel(x_ref, w_ref, o_ref):
    # x_ref: (1, TM, Fin), w_ref: (Fin, Fout_pad), o_ref: (1, TM, Fout_pad)
    o_ref[0] = jnp.dot(
        x_ref[0], w_ref[...], preferred_element_type=jnp.float32
    ).astype(o_ref.dtype)


# ---------------------------------------------------------------------------
# Kernel 2 (fast path, num_k == 1): out = adj @ support (+ bias), no scratch
# ---------------------------------------------------------------------------
def _adj_kernel_single_nobias(adj_ref, s_ref, o_ref):
    o_ref[0] = jnp.dot(
        adj_ref[0], s_ref[0], preferred_element_type=jnp.float32
    ).astype(o_ref.dtype)


def _adj_kernel_single_bias(adj_ref, s_ref, b_ref, o_ref):
    acc = jnp.dot(adj_ref[0], s_ref[0], preferred_element_type=jnp.float32)
    o_ref[0] = (acc + b_ref[...]).astype(o_ref.dtype)


# ---------------------------------------------------------------------------
# Kernel 2 (general path): tiled contraction with f32 VMEM accumulator
# ---------------------------------------------------------------------------
def _adj_kernel_tiled_nobias(adj_ref, s_ref, o_ref, acc_ref):
    # adj_ref: (1, TM, TK), s_ref: (1, TK, Fout_pad)
    # o_ref:   (1, TM, Fout_pad), acc_ref: (TM, Fout_pad) f32
    k = pl.program_id(2)

    @pl.when(k == 0)
    def _():
        acc_ref[...] = jnp.zeros_like(acc_ref)

    acc_ref[...] += jnp.dot(
        adj_ref[0], s_ref[0], preferred_element_type=jnp.float32
    )

    @pl.when(k == pl.num_programs(2) - 1)
    def _():
        o_ref[0] = acc_ref[...].astype(o_ref.dtype)


def _adj_kernel_tiled_bias(adj_ref, s_ref, b_ref, o_ref, acc_ref):
    k = pl.program_id(2)

    @pl.when(k == 0)
    def _():
        acc_ref[...] = jnp.zeros_like(acc_ref)

    acc_ref[...] += jnp.dot(
        adj_ref[0], s_ref[0], preferred_element_type=jnp.float32
    )

    @pl.when(k == pl.num_programs(2) - 1)
    def _():
        # Bias added once, in f32, only in the finalize step (not per k-tile).
        o_ref[0] = (acc_ref[...] + b_ref[...]).astype(o_ref.dtype)


def graph_convolution(x, adj, weight, bias=None, *, tile_n=256, compute_dtype=None):
    """Pallas implementation of GraphConvolution.forward.

    x:      (B, N, Fin)
    adj:    (B, N, N)
    weight: (Fin, Fout)
    bias:   (1, 1, Fout) or None
    returns (B, N, Fout) in x.dtype
    """
    B, N, Fin = x.shape
    Fin_w, Fout = weight.shape
    assert Fin_w == Fin, "weight shape mismatch"
    out_dtype = x.dtype
    if compute_dtype is None:
        compute_dtype = x.dtype  # pass jnp.bfloat16 on v6e/v7x for bf16 MXU path

    # Lane-dense / MXU-friendly padded shapes.
    Fout_pad = _round_up(Fout, 128)
    tile_n = min(_round_up(tile_n, 128), _round_up(N, 128))  # shrink for tiny graphs
    N_pad = _round_up(N, tile_n)
    num_i = N_pad // tile_n   # output row tiles
    num_k = N_pad // tile_n   # contraction tiles

    # Zero padding keeps the math exact on the original region (skipped if aligned).
    xp = x if N_pad == N else jnp.pad(x, ((0, 0), (0, N_pad - N), (0, 0)))
    xp = xp.astype(compute_dtype)
    adjp = adj if N_pad == N else jnp.pad(
        adj, ((0, 0), (0, N_pad - N), (0, N_pad - N)))
    adjp = adjp.astype(compute_dtype)
    wp = weight if Fout_pad == Fout else jnp.pad(
        weight, ((0, 0), (0, Fout_pad - Fout)))
    wp = wp.astype(compute_dtype)

    # --- Kernel 1: support = x @ W, computed once (never per adj row tile). ---
    support = pl.pallas_call(
        _support_kernel,
        out_shape=jax.ShapeDtypeStruct((B, N_pad, Fout_pad), compute_dtype),
        grid_spec=pltpu.PrefetchScalarGridSpec(
            num_scalar_prefetch=0,
            grid=(B, num_i),
            in_specs=[
                pl.BlockSpec((1, tile_n, Fin), lambda b, i: (b, i, 0)),
                pl.BlockSpec((Fin, Fout_pad), lambda b, i: (0, 0)),
            ],
            out_specs=pl.BlockSpec((1, tile_n, Fout_pad), lambda b, i: (b, i, 0)),
        ),
        compiler_params=pltpu.CompilerParams(
            dimension_semantics=("parallel", "parallel"),
        ),
    )(xp, wp)

    # Optional bias, padded and kept in f32 (added once at finalize).
    bias_p = None
    if bias is not None:
        bias_p = bias.reshape(1, Fout).astype(jnp.float32)
        if Fout_pad != Fout:
            bias_p = jnp.pad(bias_p, ((0, 0), (0, Fout_pad - Fout)))

    # --- Kernel 2: out = adj @ support (+ bias). ---
    if num_k == 1:
        # Fast path: whole contraction in one block, no scratch / no pl.when.
        in_specs = [
            pl.BlockSpec((1, tile_n, N_pad), lambda b, i: (b, i, 0)),
            pl.BlockSpec((1, N_pad, Fout_pad), lambda b, i: (b, 0, 0)),
        ]
        operands = [adjp, support]
        if bias_p is not None:
            in_specs.append(pl.BlockSpec((1, Fout_pad), lambda b, i: (0, 0)))
            operands.append(bias_p)
            kernel = _adj_kernel_single_bias
        else:
            kernel = _adj_kernel_single_nobias

        out_p = pl.pallas_call(
            kernel,
            out_shape=jax.ShapeDtypeStruct((B, N_pad, Fout_pad), out_dtype),
            grid_spec=pltpu.PrefetchScalarGridSpec(
                num_scalar_prefetch=0,
                grid=(B, num_i),
                in_specs=in_specs,
                out_specs=pl.BlockSpec((1, tile_n, Fout_pad), lambda b, i: (b, i, 0)),
            ),
            compiler_params=pltpu.CompilerParams(
                dimension_semantics=("parallel", "parallel"),
            ),
        )(*operands)
    else:
        # General path: tiled contraction, f32 accumulator in VMEM.
        in_specs = [
            pl.BlockSpec((1, tile_n, tile_n), lambda b, i, k: (b, i, k)),
            pl.BlockSpec((1, tile_n, Fout_pad), lambda b, i, k: (b, k, 0)),
        ]
        operands = [adjp, support]
        if bias_p is not None:
            in_specs.append(pl.BlockSpec((1, Fout_pad), lambda b, i, k: (0, 0)))
            operands.append(bias_p)
            kernel = _adj_kernel_tiled_bias
        else:
            kernel = _adj_kernel_tiled_nobias

        out_p = pl.pallas_call(
            kernel,
            out_shape=jax.ShapeDtypeStruct((B, N_pad, Fout_pad), out_dtype),
            grid_spec=pltpu.PrefetchScalarGridSpec(
                num_scalar_prefetch=0,
                grid=(B, num_i, num_k),
                in_specs=in_specs,
                out_specs=pl.BlockSpec((1, tile_n, Fout_pad), lambda b, i, k: (b, i, 0)),
                scratch_shapes=[pltpu.VMEM((tile_n, Fout_pad), jnp.float32)],
            ),
            compiler_params=pltpu.CompilerParams(
                dimension_semantics=("parallel", "parallel", "arbitrary"),
            ),
        )(*operands)

    if N_pad == N and Fout_pad == Fout:
        return out_p
    return out_p[:, :N, :Fout]


def init_gcn_params(key, in_features, out_features, bias=False):
    """Matches reset_parameters: U(-stdv, stdv), stdv = 1/sqrt(out_features)."""
    stdv = 1.0 / math.sqrt(out_features)
    kw, kb = jax.random.split(key)
    weight = jax.random.uniform(
        kw, (in_features, out_features), dtype=jnp.float32, minval=-stdv, maxval=stdv
    )
    b = None
    if bias:
        b = jax.random.uniform(
            kb, (1, 1, out_features), dtype=jnp.float32, minval=-stdv, maxval=stdv
        )
    return weight, b


if __name__ == "__main__":
    key = jax.random.PRNGKey(0)

    # --- Case 1: small shapes, with bias (fast path, exact f32, tight tol). ---
    B, N, Fin, Fout = 2, 8, 16, 32
    k_x, k_adj, k_p, k2 = jax.random.split(key, 4)
    x = jax.random.normal(k_x, (B, N, Fin), dtype=jnp.float32)
    adj = jax.random.uniform(k_adj, (B, N, N), dtype=jnp.float32)
    adj = adj / jnp.sum(adj, axis=-1, keepdims=True)   # row-normalized adjacency
    weight, bias = init_gcn_params(k_p, Fin, Fout, bias=True)

    out = jax.block_until_ready(graph_convolution(x, adj, weight, bias))
    ref = jnp.matmul(adj, jnp.matmul(x, weight)) + bias
    assert out.shape == (B, N, Fout)
    assert jnp.allclose(out, ref, atol=1e-5, rtol=1e-5), "case 1 mismatch"

    # --- Case 2: non-aligned shapes, no bias, small tile so num_k > 1 -------
    #     (exercises zero-padding + the k-tiled accumulator path).
    B2, N2, Fin2, Fout2 = 2, 200, 24, 96
    k_x2, k_adj2, k_p2 = jax.random.split(k2, 3)
    x2 = jax.random.normal(k_x2, (B2, N2, Fin2), dtype=jnp.float32)
    adj2 = jax.random.uniform(k_adj2, (B2, N2, N2), dtype=jnp.float32)
    adj2 = adj2 / jnp.sum(adj2, axis=-1, keepdims=True)
    w2, _ = init_gcn_params(k_p2, Fin2, Fout2, bias=False)

    out2 = jax.block_until_ready(
        graph_convolution(x2, adj2, w2, None, tile_n=128)
    )
    ref2 = jnp.matmul(adj2, jnp.matmul(x2, w2))
    assert out2.shape == (B2, N2, Fout2)
    # Looser tolerance: kernel vs XLA may use different MXU f32 pass counts.
    assert jnp.allclose(out2, ref2, atol=1e-3, rtol=1e-2), "case 2 mismatch"

    print("KERNEL_OK")
</pallas_src>

<mosaic_0001>
module attributes {stable_mosaic.version = 11 : i64} {
  func.func @_support_kernel(%arg0: i32, %arg1: i32, %arg2: memref<1x128x16xf32, #tpu.memory_space<vmem>>, %arg3: memref<16x128xf32, #tpu.memory_space<vmem>>, %arg4: memref<1x128x128xf32, #tpu.memory_space<vmem>>) attributes {dimension_semantics = [#tpu.dimension_semantics<parallel>, #tpu.dimension_semantics<parallel>], iteration_bounds = array<i64: 2, 1>, scalar_prefetch = 0 : i64, scratch_operands = 0 : i64, tpu.core_type = #tpu.core_type<tc>, window_params = [{transform_indices = @transform_0, window_bounds = array<i64: 1, 128, 16>}, {pipeline_mode = #tpu.pipeline_mode<synchronous>, transform_indices = @transform_1, window_bounds = array<i64: 16, 128>}, {transform_indices = @transform_2, window_bounds = array<i64: 1, 128, 128>}]} {
    %c0 = arith.constant 0 : index
    %c0_0 = arith.constant 0 : index
    %c0_1 = arith.constant 0 : index
    %0 = vector.load %arg2[%c0, %c0_0, %c0_1] : memref<1x128x16xf32, #tpu.memory_space<vmem>>, vector<1x128x16xf32>
    %1 = vector.shape_cast %0 : vector<1x128x16xf32> to vector<128x16xf32>
    %c0_2 = arith.constant 0 : index
    %c0_3 = arith.constant 0 : index
    %2 = vector.load %arg3[%c0_2, %c0_3] : memref<16x128xf32, #tpu.memory_space<vmem>>, vector<16x128xf32>
    %cst = arith.constant dense<0.000000e+00> : vector<128x128xf32>
    %3 = tpu.matmul %1, %2, %cst {dimension_numbers = #tpu.dot_dimension_numbers<[1], [0], [0], [1], [0, 0, 1, 1], [], []>} : vector<128x16xf32>, vector<16x128xf32>, vector<128x128xf32> -> vector<128x128xf32>
    %c0_4 = arith.constant 0 : index
    %c0_5 = arith.constant 0 : index
    %c0_6 = arith.constant 0 : index
    %4 = vector.load %arg4[%c0_4, %c0_5, %c0_6] : memref<1x128x128xf32, #tpu.memory_space<vmem>>, vector<1x128x128xf32>
    %5 = vector.shape_cast %4 : vector<1x128x128xf32> to vector<128x128xf32>
    %6 = vector.shape_cast %3 : vector<128x128xf32> to vector<1x128x128xf32>
    tpu.vector_store %arg4[%c0_4, %c0_5, %c0_6], %6 {strides = array<i32>} : memref<1x128x128xf32, #tpu.memory_space<vmem>>, vector<1x128x128xf32>,
    return
  }
  func.func @transform_0(%arg0: i32, %arg1: i32) -> (i32, i32, i32) {
    %c0_i32 = arith.constant 0 : i32
    %c0_i32_0 = arith.constant 0 : i32
    return %arg0, %arg1, %c0_i32 : i32, i32, i32
  }
  func.func @transform_1(%arg0: i32, %arg1: i32) -> (i32, i32) {
    %c0_i32 = arith.constant 0 : i32
    %c0_i32_0 = arith.constant 0 : i32
    %c0_i32_1 = arith.constant 0 : i32
    return %c0_i32, %c0_i32_0 : i32, i32
  }
  func.func @transform_2(%arg0: i32, %arg1: i32) -> (i32, i32, i32) {
    %c0_i32 = arith.constant 0 : i32
    %c0_i32_0 = arith.constant 0 : i32
    return %arg0, %arg1, %c0_i32 : i32, i32, i32
  }
}

</mosaic_0001>

<llo_original>
// kernel: tpu_custom_call.1
$region0: #{tpu_custom_call.1}
  #allocation0 [shape = 'u32[]', space=smem, size = 0x4, offset = 0x4, fixed_abs, tag = 'smem constant byte address 0x4 - core index']
  #allocation1 [shape = 'u32[72,128]{1,0:T(1,128)}', space=vmem, size = 0x9000, scoped, tag = 'internal scratch']
  %s0 = inlined_call_operand.vmem [shape: f32[2,128,16], index: 0, kind: input, shape index: {}]
  %s1 = inlined_call_operand.vmem [shape: f32[16,128], index: 1, kind: input, shape index: {}]
  %s2 = inlined_call_operand.hbm [shape: f32[2,128,128], index: 2, kind: output, shape index: {}]
  %s3 = sld [smem:[#allocation0]]
  $region41: #{tpu_custom_call.1} parent=0
    _
  %s5 = ssub.s32 1, %s3
  %s6 = scalar_select 0, %s5, %s3
  $region1: #{tpu_custom_call.1} parent=0
    #allocation2 [shape = 'u8[131072]{0}', space=vmem, size = 0x20000, scoped, tag = 'output window, operand 0']
    #allocation3 [shape = 's32[2]{0}', space=sflag, size = 0x8, scoped, tag = 'scoped memory for tpu_custom_call.1']
    %7 = vsyncpa [#allocation3], 0
    %s8 = scalar_lea.sflag [#allocation3], 1
    %9 = vsyncpa %s8, 0
    loop: start=0, step=1, limit=4
    $region2: #{tpu_custom_call.1} parent=1 // loop_pre_header
      _
    $region3: #{tpu_custom_call.1} parent=1 // loop_header
      %s11 = sphi 0, %s15
      %p12 = scmp.ge.s32.totalorder %s11, 4
      %s18 = sphi 0, %s30
      %s19 = sphi 0, %s26
      %s20 = sphi 0, %s18
      %s21 = sphi 0, %s19
      %s22 = sphi 0, %s20
      %s23 = sphi 0, %s21
      %s35 = sphi 0, %s37
      %s38 = sphi 0, %s35
      %s39 = sphi 0, %s38
      %s55 = sphi 0, %s39
      %s59 = sphi 0, %s59
      %s61 = sphi 0, %s59
      %s62 = sphi 0, %s61
      %s76 = sphi 0, %s62
      %s84 = sphi 0, %s86
      %s87 = sphi 0, %s84
      %s88 = sphi 0, %s87
      %s104 = sphi 0, %s88
    $region4: #{tpu_custom_call.1} parent=1 // loop_header_branch
      %14 = sbr.rel (%p12) target = $region8
    $region5: #{tpu_custom_call.1} parent=1 // loop_body
      %s16 = ssub.s32 %s11, 1
      %s17 = ssub.s32 %s11, 2
      %s24 = sadd.s32 1, %s19
      %p25 = scmp.ge.s32.totalorder %s24, 1
      %s26 = scalar_select %p25, 0, %s24
      %s27 = sadd.s32 1, %s18
      %s28 = scalar_select %p25, %s27, %s18
      %p29 = scmp.ge.s32.totalorder %s28, 2
      %s30 = scalar_select %p29, 0, %s28
      %s31 = ssub.s32 %s18, %s30
      %s32 = ssub.s32 %s19, %s26
      %s33 = sor.u32 %s31, %s32
      %p34 = scmp.eq.s32.totalorder %s33, 0
      %s36 = sadd.s32 %s35, 1
      %s37 = scalar_select %p34, %s35, %s36
      %p40 = pneg %p34
      %p41 = scmp.eq.s32.totalorder %s11, 1
      %p42 = por %p40, %p41
      %p43 = scmp.ne.s32.totalorder %s35, %s38
      %p44 = scmp.eq.s32.totalorder %s11, 0
      %p45 = por %p43, %p44
      %p46 = scmp.ne.s32.totalorder %s35, %s38
      %p47 = scmp.eq.s32.totalorder %s16, 1
      %p48 = por %p46, %p47
      %p49 = scmp.ne.s32.totalorder %s38, %s39
      %p50 = scmp.eq.s32.totalorder %s16, 0
      %p51 = por %p49, %p50
      %p52 = scmp.ne.s32.totalorder %s38, %s39
      %p53 = scmp.eq.s32.totalorder %s17, 1
      %p54 = por %p52, %p53
      %p56 = scmp.ne.s32.totalorder %s39, %s55
      %p57 = scmp.eq.s32.totalorder %s17, 0
      %p58 = por %p56, %p57
      %s60 = sadd.s32 %s59, 1
      %p63 = scmp.eq.s32.totalorder %s11, 1
      %p64 = scmp.ne.s32.totalorder %s59, %s61
      %p65 = scmp.eq.s32.totalorder %s11, 0
      %p66 = por %p64, %p65
      %p67 = scmp.ne.s32.totalorder %s59, %s61
      %p68 = scmp.eq.s32.totalorder %s16, 1
      %p69 = por %p67, %p68
      %p70 = scmp.ne.s32.totalorder %s61, %s62
      %p71 = scmp.eq.s32.totalorder %s16, 0
      %p72 = por %p70, %p71
      %p73 = scmp.ne.s32.totalorder %s61, %s62
      %p74 = scmp.eq.s32.totalorder %s17, 1
      %p75 = por %p73, %p74
      %p77 = scmp.ne.s32.totalorder %s62, %s76
      %p78 = scmp.eq.s32.totalorder %s17, 0
      %p79 = por %p77, %p78
      %s80 = ssub.s32 %s18, %s30
      %s81 = ssub.s32 %s19, %s26
      %s82 = sor.u32 %s80, %s81
      %p83 = scmp.eq.s32.totalorder %s82, 0
      %s85 = sadd.s32 %s84, 1
      %s86 = scalar_select %p83, %s84, %s85
      %p89 = pneg %p83
      %p90 = scmp.eq.s32.totalorder %s11, 1
      %p91 = por %p89, %p90
      %p92 = scmp.ne.s32.totalorder %s84, %s87
      %p93 = scmp.eq.s32.totalorder %s11, 0
      %p94 = por %p92, %p93
      %p95 = scmp.ne.s32.totalorder %s84, %s87
      %p96 = scmp.eq.s32.totalorder %s16, 1
      %p97 = por %p95, %p96
      %p98 = scmp.ne.s32.totalorder %s87, %s88
      %p99 = scmp.eq.s32.totalorder %s16, 0
      %p100 = por %p98, %p99
      %p101 = scmp.ne.s32.totalorder %s87, %s88
      %p102 = scmp.eq.s32.totalorder %s17, 1
      %p103 = por %p101, %p102
      %p105 = scmp.ne.s32.totalorder %s88, %s104
      %p106 = scmp.eq.s32.totalorder %s17, 0
      %p107 = por %p105, %p106
      %p108 = scmp.le.s32.totalorder 1, %s11
      %p109 = scmp.lt.s32.totalorder %s11, 3
      %p110 = pnand %p108, %p109
      %p111 = pneg %p110
      // Predicated region
      $region9: #{tpu_custom_call.1} parent=5 // pred_check
        _
      $region10: #{tpu_custom_call.1} parent=5 // pred_check_branch
        %113 = sbr.rel (%p110) target = $region12
      $region11: #{tpu_custom_call.1} parent=5 // pred_region
        %s114 = ssub.s32 %s11, 1
        // Predicated region
        $region13: #{tpu_custom_call.1} parent=11 // pred_check
          %p115 = pneg %p72
        $region14: #{tpu_custom_call.1} parent=11 // pred_check_branch
          %117 = sbr.rel (%p115) target = $region16
        $region15: #{tpu_custom_call.1} parent=11 // pred_region
          _
        $region16: #{tpu_custom_call.1} parent=11 // pred_fallthru
          _
      $region12: #{tpu_custom_call.1} parent=5 // pred_fallthru
        _
      %p118 = scmp.lt.s32.totalorder %s11, 2
      // Predicated region
      $region17: #{tpu_custom_call.1} parent=5 // pred_check
        %p119 = pneg %p118
      $region18: #{tpu_custom_call.1} parent=5 // pred_check_branch
        %121 = sbr.rel (%p119) target = $region20
      $region19: #{tpu_custom_call.1} parent=5 // pred_region
        // Predicated region
        $region21: #{tpu_custom_call.1} parent=19 // pred_check
          %p122 = pneg %p45
        $region22: #{tpu_custom_call.1} parent=19 // pred_check_branch
          %124 = sbr.rel (%p122) target = $region24
        $region23: #{tpu_custom_call.1} parent=19 // pred_region
          %s125 = smul.u32 16, %s19
          %p126 = scmp.lt.s32.totalorder %s18, 1
          %s127 = scalar_select %p126, %s18, 1
          %p128 = scmp.lt.s32.totalorder %s125, 15
          %s129 = scalar_select %p128, %s125, 15
          %s130 = smul.addr %s127, 16
          %s131 = sadd.s32 %s129, %s130
          %s132 = smul.addr %s131, 8
          %s133 = scalar_lea.vmem %s0, %s132
          %s134 = smul.u32 16, %s19
        $region24: #{tpu_custom_call.1} parent=19 // pred_fallthru
          _
      $region20: #{tpu_custom_call.1} parent=5 // pred_fallthru
        _
      %p135 = scmp.le.s32.totalorder 1, %s11
      %p136 = scmp.lt.s32.totalorder %s11, 3
      %p137 = pnand %p135, %p136
      %p138 = pneg %p137
      // Predicated region
      $region25: #{tpu_custom_call.1} parent=5 // pred_check
        _
      $region26: #{tpu_custom_call.1} parent=5 // pred_check_branch
        %140 = sbr.rel (%p137) target = $region28
      $region27: #{tpu_custom_call.1} parent=5 // pred_region
        %s141 = ssub.s32 %s11, 1
        %s142 = smul.u32 16, %s21
        %p143 = scmp.lt.s32.totalorder %s20, 1
        %s144 = scalar_select %p143, %s20, 1
        %p145 = scmp.lt.s32.totalorder %s142, 15
        %s146 = scalar_select %p145, %s142, 15
        %s147 = smul.addr %s144, 16
        %s148 = sadd.s32 %s146, %s147
        %s149 = smul.addr %s148, 8
        %s150 = scalar_lea.vmem %s0, %s149
        %p151 = pneg %p51
        %p152 = pneg %p48
        %p153 = pneg %p72
        %p154 = pneg %p69
        %p155 = pneg %p100
        %p156 = pneg %p97
        %s157 = sand.u32 %s87, 1
        %s158 = scalar_lea.sflag [#allocation3], %s157
        %s159 = sand.u32 %s87, 1
        %s160 = smul.addr %s159, 128
        %s161 = scalar_lea.vmem [#allocation2], %s160
        %s162 = smul.u32 16, %s21
        %p163 = scmp.lt.s32.totalorder %s20, 1
        %s164 = scalar_select %p163, %s20, 1
        %p165 = scmp.lt.s32.totalorder %s162, 15
        %s166 = scalar_select %p165, %s162, 15
        %s167 = smul.addr %s164, 16
        %s168 = sadd.s32 %s166, %s167
        %s169 = smul.addr %s168, 8
        %s170 = scalar_lea.vmem %s0, %s169
        %s171 = smul.u32 16, %s21
        %s172 = smul.u32 16, %s21
        %v173 = vld [vmem:[%s170] sm:$0xff]
        %v174 = vld [vmem:[%s170 + $0x8] sm:$0xff]
        %v175 = vld [vmem:[%s170 + $0x10] sm:$0xff]
        %v176 = vld [vmem:[%s170 + $0x18] sm:$0xff]
        %v177 = vld [vmem:[%s170 + $0x20] sm:$0xff]
        %v178 = vld [vmem:[%s170 + $0x28] sm:$0xff]
        %v179 = vld [vmem:[%s170 + $0x30] sm:$0xff]
        %v180 = vld [vmem:[%s170 + $0x38] sm:$0xff]
        %v181 = vld [vmem:[%s170 + $0x40] sm:$0xff]
        %v182 = vld [vmem:[%s170 + $0x48] sm:$0xff]
        %v183 = vld [vmem:[%s170 + $0x50] sm:$0xff]
        %v184 = vld [vmem:[%s170 + $0x58] sm:$0xff]
        %v185 = vld [vmem:[%s170 + $0x60] sm:$0xff]
        %v186 = vld [vmem:[%s170 + $0x68] sm:$0xff]
        %v187 = vld [vmem:[%s170 + $0x70] sm:$0xff]
        %v188 = vld [vmem:[%s170 + $0x78] sm:$0xff]
        %v189 = vld [vmem:[%s1] sm:$0xff]
        %v190 = vld [vmem:[%s1 + $0x8] sm:$0xff]
        %vm191 = vcmask 130048
        %v193 = vsel %vm191, %v173, 0
        %v196 = vsel %vm191, %v174, 0
        %v199 = vsel %vm191, %v175, 0
        %v202 = vsel %vm191, %v176, 0
        %v205 = vsel %vm191, %v177, 0
        %v208 = vsel %vm191, %v178, 0
        %v211 = vsel %vm191, %v179, 0
        %v214 = vsel %vm191, %v180, 0
        %v217 = vsel %vm191, %v181, 0
        %v220 = vsel %vm191, %v182, 0
        %v223 = vsel %vm191, %v183, 0
        %v226 = vsel %vm191, %v184, 0
        %v229 = vsel %vm191, %v185, 0
        %v232 = vsel %vm191, %v186, 0
        %v235 = vsel %vm191, %v187, 0
        %v238 = vsel %vm191, %v188, 0
        %240 = vmatpush.msra.mxu0 0.0
        %241 = vmatpush.msra.mxu0 0.0
        %242 = vmatpush.msra.mxu0 0.0
        %243 = vmatpush.msra.mxu0 0.0
        %244 = vmatpush.msra.mxu0 0.0
        %245 = vmatpush.msra.mxu0 0.0
        %246 = vmatpush.msra.mxu0 0.0
        %247 = vmatpush.msra.mxu0 0.0
        %248 = vmatpush.msra.mxu0 0.0
        %249 = vmatpush.msra.mxu0 0.0
        %250 = vmatpush.msra.mxu0 0.0
        %251 = vmatpush.msra.mxu0 0.0
        %252 = vmatpush.msra.mxu0 0.0
        %253 = vmatpush.msra.mxu0 0.0
        %254 = vmatpush.msra.mxu0 %v190
        %255 = vmatpush.msra.mxu0 %v189
        %256 = vmatmul.f32.gmra.mxu0 %v193
        %v257 = vpop.f32.mrf.mxu0
        %v258 = vadd.f32 0.0, %v257
        %259 = vmatmul.f32.gmra.mxu0 %v196
        %v260 = vpop.f32.mrf.mxu0
        %v261 = vadd.f32 0.0, %v260
        %262 = vmatmul.f32.gmra.mxu0 %v199
        %v263 = vpop.f32.mrf.mxu0
        %v264 = vadd.f32 0.0, %v263
        %265 = vmatmul.f32.gmra.mxu0 %v202
        %v266 = vpop.f32.mrf.mxu0
        %v267 = vadd.f32 0.0, %v266
        %268 = vmatmul.f32.gmra.mxu0 %v205
        %v269 = vpop.f32.mrf.mxu0
        %v270 = vadd.f32 0.0, %v269
        %271 = vmatmul.f32.gmra.mxu0 %v208
        %v272 = vpop.f32.mrf.mxu0
        %v273 = vadd.f32 0.0, %v272
        %274 = vmatmul.f32.gmra.mxu0 %v211
        %v275 = vpop.f32.mrf.mxu0
        %v276 = vadd.f32 0.0, %v275
        %277 = vmatmul.f32.gmra.mxu0 %v214
        %v278 = vpop.f32.mrf.mxu0
        %v279 = vadd.f32 0.0, %v278
        %280 = vmatmul.f32.gmra.mxu0 %v217
        %v281 = vpop.f32.mrf.mxu0
        %v282 = vadd.f32 0.0, %v281
        %283 = vmatmul.f32.gmra.mxu0 %v220
        %v284 = vpop.f32.mrf.mxu0
        %v285 = vadd.f32 0.0, %v284
        %286 = vmatmul.f32.gmra.mxu0 %v223
        %v287 = vpop.f32.mrf.mxu0
        %v288 = vadd.f32 0.0, %v287
        %289 = vmatmul.f32.gmra.mxu0 %v226
        %v290 = vpop.f32.mrf.mxu0
        %v291 = vadd.f32 0.0, %v290
        %292 = vmatmul.f32.gmra.mxu0 %v229
        %v293 = vpop.f32.mrf.mxu0
        %v294 = vadd.f32 0.0, %v293
        %295 = vmatmul.f32.gmra.mxu0 %v232
        %v296 = vpop.f32.mrf.mxu0
        %v297 = vadd.f32 0.0, %v296
        %298 = vmatmul.f32.gmra.mxu0 %v235
        %v299 = vpop.f32.mrf.mxu0
        %v300 = vadd.f32 0.0, %v299
        %301 = vmatmul.f32.gmra.mxu0 %v238
        %v302 = vpop.f32.mrf.mxu0
        %v303 = vadd.f32 0.0, %v302
        %304 = vdwg.mxu0
        %305 = vst [vmem:[%s161] sm:$0xff] %v258
        %306 = vst [vmem:[%s161 + $0x8] sm:$0xff] %v261
        %307 = vst [vmem:[%s161 + $0x10] sm:$0xff] %v264
        %308 = vst [vmem:[%s161 + $0x18] sm:$0xff] %v267
        %309 = vst [vmem:[%s161 + $0x20] sm:$0xff] %v270
        %310 = vst [vmem:[%s161 + $0x28] sm:$0xff] %v273
        %311 = vst [vmem:[%s161 + $0x30] sm:$0xff] %v276
        %312 = vst [vmem:[%s161 + $0x38] sm:$0xff] %v279
        %313 = vst [vmem:[%s161 + $0x40] sm:$0xff] %v282
        %314 = vst [vmem:[%s161 + $0x48] sm:$0xff] %v285
        %315 = vst [vmem:[%s161 + $0x50] sm:$0xff] %v288
        %316 = vst [vmem:[%s161 + $0x58] sm:$0xff] %v291
        %317 = vst [vmem:[%s161 + $0x60] sm:$0xff] %v294
        %318 = vst [vmem:[%s161 + $0x68] sm:$0xff] %v297
        %319 = vst [vmem:[%s161 + $0x70] sm:$0xff] %v300
        %320 = vst [vmem:[%s161 + $0x78] sm:$0xff] %v303
        %s321 = sand.u32 %s87, 1
        %s322 = scalar_lea.sflag [#allocation3], %s321
        %s323 = sand.u32 %s87, 1
        %s324 = smul.addr %s323, 128
        %s325 = scalar_lea.vmem [#allocation2], %s324
        // Predicated region
        $region29: #{tpu_custom_call.1} parent=27 // pred_check
          %p326 = pneg %p97
        $region30: #{tpu_custom_call.1} parent=27 // pred_check_branch
          %328 = sbr.rel (%p326) target = $region32
        $region31: #{tpu_custom_call.1} parent=27 // pred_region
          %s329 = smul.u32 16, %s21
          %331 = vsyncadd %s322, 0
          %s332 = smul.addr %s20, 16
          %s333 = sadd.s32 %s329, %s332
          %s334 = smul.addr %s333, 8
          %s335 = scalar_lea.hbm %s2, %s334
          %s336 = sshll.u32 %s325, 4
          %s337 = int_to_ptr.vmem [resolvable:$true] %s336
          %s338 = sshll.u32 %s335, 4
          %s339 = int_to_ptr.hbm [resolvable:$true] %s338
          %344 = dma.vmem_to_hbm [thread:$0]  %s337, 2048, %s339, %s322, 128, 128, 8
        $region32: #{tpu_custom_call.1} parent=27 // pred_fallthru
          _
      $region28: #{tpu_custom_call.1} parent=5 // pred_fallthru
        _
      %p345 = scmp.le.s32.totalorder 2, %s11
      // Predicated region
      $region33: #{tpu_custom_call.1} parent=5 // pred_check
        %p346 = pneg %p345
      $region34: #{tpu_custom_call.1} parent=5 // pred_check_branch
        %348 = sbr.rel (%p346) target = $region36
      $region35: #{tpu_custom_call.1} parent=5 // pred_region
        %s349 = ssub.s32 %s11, 2
        // Predicated region
        $region37: #{tpu_custom_call.1} parent=35 // pred_check
          %p350 = pneg %p103
        $region38: #{tpu_custom_call.1} parent=35 // pred_check_branch
          %352 = sbr.rel (%p350) target = $region40
        $region39: #{tpu_custom_call.1} parent=35 // pred_region
          %s353 = sand.u32 %s88, 1
          %s354 = scalar_lea.sflag [#allocation3], %s353
          %s355 = sand.u32 %s88, 1
          %s356 = smul.addr %s355, 128
          %s357 = scalar_lea.vmem [#allocation2], %s356
          %359 = dma.done %s354, 2048
        $region40: #{tpu_custom_call.1} parent=35 // pred_fallthru
          _
      $region36: #{tpu_custom_call.1} parent=5 // pred_fallthru
        _
    $region6: #{tpu_custom_call.1} parent=1 // loop_footer
      %s15 = sadd.s32 1, %s11
    $region7: #{tpu_custom_call.1} parent=1 // loop_footer_branch
      %10 = sbr.rel target = $region3
    $region8: #{tpu_custom_call.1} parent=1 // loop_exit
      _
    %360 = vsyncpa [#allocation3], 1
    %s361 = scalar_lea.sflag [#allocation3], 1
    %362 = vsyncpa %s361, 1

</llo_original>
